<compile_context>
chip_gen: v6e
topology: v6e:2x2x1
jax: 0.10.0
libtpu: 0.0.40
codegen_flags: <defaults>
</compile_context>

<pallas_src>
import math
import functools

import jax
import jax.numpy as jnp
from jax.experimental import pallas as pl
from jax.experimental.pallas import tpu as pltpu

# ----------------------------- module config ------------------------------
IN_PLANES   = 4
OUT_PLANES  = 8
KERNEL_SIZE = 3
KERNEL_NUM  = 4
GROUPS      = 1
REDUCTION   = 0.0625
MIN_CHANNEL = 16
ATTN_CH     = max(int(IN_PLANES * REDUCTION), MIN_CHANNEL)   # = 16
TEMPERATURE = 1.0
BN_EPS      = 1e-5

# fused-head lane layout inside the single 128-lane output slab
N_CH, N_FI, N_SP, N_KE = IN_PLANES, OUT_PLANES, KERNEL_SIZE * KERNEL_SIZE, KERNEL_NUM
OFF_CH = 0
OFF_FI = OFF_CH + N_CH            # 4
OFF_SP = OFF_FI + N_FI            # 12
OFF_KE = OFF_SP + N_SP            # 21
TOTAL  = OFF_KE + N_KE            # 25
OUT_LANES = 128                   # lane-dense output width

B, H, W = 2, 16, 16

MAX_SPATIAL_TILE = 8192           # lane columns per streamed GAP tile (general path)


# ------------------------------ kernel bodies -------------------------------
def _fused_heads(pooled, fcw, wall, ball):
    """pooled: (B_pad, C) spatial sums (1/HW + BN scale folded into fcw).
    Returns the (B_pad, 128) lane-packed head slab."""
    # fc (+ folded BN eval-scale + folded 1/HW) then ReLU
    h = jnp.maximum(
        jnp.dot(pooled, fcw, preferred_element_type=jnp.float32), 0.0)  # (B_pad, 16)

    # One fused matmul for all four heads (1/temperature folded into wall/ball).
    logits = jnp.dot(h, wall, preferred_element_type=jnp.float32) + ball

    lane = jax.lax.broadcasted_iota(jnp.int32, logits.shape, 1)

    # sigmoid heads (channel | filter | spatial) -- exact, stays in (0, 1)
    sig = 1.0 / (1.0 + jnp.exp(-logits))

    # kernel-attention softmax over lanes [OFF_KE, OFF_KE + N_KE)
    k_mask = jnp.logical_and(lane >= OFF_KE, lane < OFF_KE + N_KE)
    kl = jnp.where(k_mask, logits, -jnp.inf)
    kmax = jnp.max(kl, axis=-1, keepdims=True)
    ke = jnp.where(k_mask, jnp.exp(kl - kmax), 0.0)
    ke = ke / jnp.sum(ke, axis=-1, keepdims=True)

    # [0:21) sigmoid heads, [21:25) softmax, rest don't-care (zero-ish)
    return jnp.where(lane < OFF_KE, sig, ke)


def attention_kernel_single(x_ref, fcw_ref, wall_ref, ball_ref, out_ref):
    """Single-shot path: whole (B_pad, C, HW) tile in VMEM, no scratch."""
    pooled = jnp.sum(x_ref[...], axis=-1)                       # (B_pad, C)
    out_ref[...] = _fused_heads(pooled, fcw_ref[...], wall_ref[...], ball_ref[...])


def attention_kernel_streamed(x_ref, fcw_ref, wall_ref, ball_ref, out_ref, acc_ref):
    """General path for large H*W: pipelined streaming GAP over spatial tiles."""
    si = pl.program_id(0)

    @pl.when(si == 0)
    def _():
        acc_ref[...] = jnp.zeros_like(acc_ref)

    acc_ref[...] += jnp.sum(x_ref[...], axis=-1)                 # (B_pad, C)

    @pl.when(si == pl.num_programs(0) - 1)
    def _():
        out_ref[...] = _fused_heads(acc_ref[...], fcw_ref[...],
                                    wall_ref[...], ball_ref[...])


# ------------------------------ wrapper -------------------------------------
def _spatial_tile(hw, cap=MAX_SPATIAL_TILE):
    """Largest multiple-of-128 divisor of hw that is <= cap, else full hw."""
    if hw <= cap:
        return hw
    t = (cap // 128) * 128
    while t >= 128:
        if hw % t == 0:
            return t
        t -= 128
    return hw


def pack_params(params, hw):
    """Fuse heads, pre-transpose to (in, out), fold BN/temperature/GAP scales.
    Call ONCE at setup; the results are passed to the (jitted) forward."""
    bn_scale = 1.0 / math.sqrt(1.0 + BN_EPS)
    inv_t = 1.0 / TEMPERATURE

    fcw = params["fc_w"].T * (bn_scale / hw)                      # (C_in, ATTN_CH)

    w_all = jnp.concatenate([params["channel_w"], params["filter_w"],
                             params["spatial_w"], params["kernel_w"]],
                            axis=0).T * inv_t                     # (ATTN_CH, 25)
    b_all = jnp.concatenate([params["channel_b"], params["filter_b"],
                             params["spatial_b"], params["kernel_b"]],
                            axis=1) * inv_t                       # (1, 25)

    w_all = jnp.pad(w_all, ((0, 0), (0, OUT_LANES - TOTAL)))      # (ATTN_CH, 128)
    b_all = jnp.pad(b_all, ((0, 0), (0, OUT_LANES - TOTAL)))      # (1, 128)
    return fcw, w_all, b_all


@functools.partial(jax.jit, static_argnums=())
def attention_forward(x, fcw, w_all, b_all):
    """x: (B, C_in, H, W) float32 NCHW.  fcw/w_all/b_all from pack_params().
    Returns the 4 attention tensors with the same shapes PyTorch produces."""
    b, c, h, w = x.shape
    hw = h * w

    # pad batch up to a multiple of 8 sublanes -> fully dense (B_pad, 128) store
    b_pad = max(8, ((b + 7) // 8) * 8)
    x_flat = x.reshape(b, c, hw)
    if b_pad != b:
        x_flat = jnp.pad(x_flat, ((0, b_pad - b), (0, 0), (0, 0)))

    tile = _spatial_tile(hw)
    n_sp = hw // tile

    flops = (2 * b_pad * c * hw                  # GAP reduction
             + 2 * b_pad * c * ATTN_CH           # fc
             + 2 * b_pad * ATTN_CH * OUT_LANES)  # fused heads
    bytes_accessed = 4 * (x_flat.size + fcw.size + w_all.size + b_all.size
                          + b_pad * OUT_LANES)
    cost = pl.CostEstimate(flops=flops,
                           transcendentals=2 * b_pad * OUT_LANES,
                           bytes_accessed=bytes_accessed)

    if n_sp == 1:
        # ---- single-shot path: one grid step, no scratch, batched matmuls ----
        out = pl.pallas_call(
            attention_kernel_single,
            out_shape=jax.ShapeDtypeStruct((b_pad, OUT_LANES), jnp.float32),
            grid_spec=pltpu.PrefetchScalarGridSpec(
                num_scalar_prefetch=0,
                grid=(1,),
                in_specs=[
                    pl.BlockSpec((b_pad, c, hw), lambda s: (0, 0, 0)),
                    pl.BlockSpec((c, ATTN_CH), lambda s: (0, 0)),
                    pl.BlockSpec((ATTN_CH, OUT_LANES), lambda s: (0, 0)),
                    pl.BlockSpec((1, OUT_LANES), lambda s: (0, 0)),
                ],
                out_specs=pl.BlockSpec((b_pad, OUT_LANES), lambda s: (0, 0)),
            ),
            compiler_params=pltpu.CompilerParams(
                dimension_semantics=("arbitrary",)),
            cost_estimate=cost,
        )(x_flat, fcw, w_all, b_all)
    else:
        # ---- general path: pipelined streaming GAP over spatial tiles ----
        # NOTE(v7x): if B grows large, promote batch to a leading "parallel"
        # grid axis so the two TensorCores split it; at B=2 it is a wash.
        out = pl.pallas_call(
            attention_kernel_streamed,
            out_shape=jax.ShapeDtypeStruct((b_pad, OUT_LANES), jnp.float32),
            grid_spec=pltpu.PrefetchScalarGridSpec(
                num_scalar_prefetch=0,
                grid=(n_sp,),
                in_specs=[
                    pl.BlockSpec((b_pad, c, tile), lambda si: (0, 0, si)),
                    pl.BlockSpec((c, ATTN_CH), lambda si: (0, 0)),
                    pl.BlockSpec((ATTN_CH, OUT_LANES), lambda si: (0, 0)),
                    pl.BlockSpec((1, OUT_LANES), lambda si: (0, 0)),
                ],
                out_specs=pl.BlockSpec((b_pad, OUT_LANES), lambda si: (0, 0)),
                scratch_shapes=[pltpu.VMEM((b_pad, c), jnp.float32)],
            ),
            compiler_params=pltpu.CompilerParams(
                dimension_semantics=("arbitrary",)),
            cost_estimate=cost,
        )(x_flat, fcw, w_all, b_all)

    out = out[:b]
    channel_attention = out[:, OFF_CH:OFF_CH + N_CH].reshape(b, N_CH, 1, 1)
    filter_attention = out[:, OFF_FI:OFF_FI + N_FI].reshape(b, N_FI, 1, 1)
    spatial_attention = out[:, OFF_SP:OFF_SP + N_SP].reshape(
        b, 1, 1, 1, KERNEL_SIZE, KERNEL_SIZE)
    kernel_attention = out[:, OFF_KE:OFF_KE + N_KE].reshape(b, N_KE, 1, 1, 1, 1)
    return channel_attention, filter_attention, spatial_attention, kernel_attention


def init_params(key):
    """Deterministic Kaiming-normal (fan_out, relu) init for the 1x1 convs,
    zero biases — mirrors Attention._initialize_weights()."""
    keys = jax.random.split(key, 5)

    def kaiming(k, out_c, in_c):
        std = math.sqrt(2.0 / out_c)  # fan_out for a 1x1 conv = out_channels
        return jax.random.normal(k, (out_c, in_c), jnp.float32) * std

    return {
        "fc_w":      kaiming(keys[0], ATTN_CH, IN_PLANES),
        "channel_w": kaiming(keys[1], IN_PLANES, ATTN_CH),
        "channel_b": jnp.zeros((1, IN_PLANES), jnp.float32),
        "filter_w":  kaiming(keys[2], OUT_PLANES, ATTN_CH),
        "filter_b":  jnp.zeros((1, OUT_PLANES), jnp.float32),
        "spatial_w": kaiming(keys[3], KERNEL_SIZE * KERNEL_SIZE, ATTN_CH),
        "spatial_b": jnp.zeros((1, KERNEL_SIZE * KERNEL_SIZE), jnp.float32),
        "kernel_w":  kaiming(keys[4], KERNEL_NUM, ATTN_CH),
        "kernel_b":  jnp.zeros((1, KERNEL_NUM), jnp.float32),
    }


if __name__ == "__main__":
    key = jax.random.PRNGKey(0)
    k_x, k_p = jax.random.split(key)
    x = jax.random.normal(k_x, (B, IN_PLANES, H, W), jnp.float32)
    params = init_params(k_p)

    # parameter packing hoisted out of the call path (done once)
    fcw, w_all, b_all = pack_params(params, H * W)
    fcw, w_all, b_all = jax.block_until_ready((fcw, w_all, b_all))

    ch, fi, sp, ke = jax.block_until_ready(attention_forward(x, fcw, w_all, b_all))

    assert ch.shape == (B, IN_PLANES, 1, 1)
    assert fi.shape == (B, OUT_PLANES, 1, 1)
    assert sp.shape == (B, 1, 1, 1, KERNEL_SIZE, KERNEL_SIZE)
    assert ke.shape == (B, KERNEL_NUM, 1, 1, 1, 1)
    # kernel attention rows must sum to 1 (softmax over kernel_num)
    assert jnp.allclose(ke.sum(axis=1), 1.0, atol=1e-5)
    # sigmoid outputs must be in (0, 1)
    assert bool(jnp.all((ch > 0) & (ch < 1)))
    assert bool(jnp.all((fi > 0) & (fi < 1)))
    assert bool(jnp.all((sp > 0) & (sp < 1)))

    print("KERNEL_OK")
</pallas_src>

<mosaic_0001>
module attributes {stable_mosaic.version = 11 : i64} {
  func.func @attention_kernel_single(%arg0: i32, %arg1: memref<8x4x256xf32, #tpu.memory_space<vmem>>, %arg2: memref<4x16xf32, #tpu.memory_space<vmem>>, %arg3: memref<16x128xf32, #tpu.memory_space<vmem>>, %arg4: memref<1x128xf32, #tpu.memory_space<vmem>>, %arg5: memref<8x128xf32, #tpu.memory_space<vmem>>) attributes {dimension_semantics = [#tpu.dimension_semantics<arbitrary>], iteration_bounds = array<i64: 1>, scalar_prefetch = 0 : i64, scratch_operands = 0 : i64, tpu.core_type = #tpu.core_type<tc>, window_params = [{pipeline_mode = #tpu.pipeline_mode<synchronous>, transform_indices = @transform_0, window_bounds = array<i64: 8, 4, 256>}, {pipeline_mode = #tpu.pipeline_mode<synchronous>, transform_indices = @transform_1, window_bounds = array<i64: 4, 16>}, {pipeline_mode = #tpu.pipeline_mode<synchronous>, transform_indices = @transform_2, window_bounds = array<i64: 16, 128>}, {pipeline_mode = #tpu.pipeline_mode<synchronous>, transform_indices = @transform_3, window_bounds = array<i64: 1, 128>}, {pipeline_mode = #tpu.pipeline_mode<synchronous>, transform_indices = @transform_4, window_bounds = array<i64: 8, 128>}]} {
    %c0 = arith.constant 0 : index
    %c0_0 = arith.constant 0 : index
    %c0_1 = arith.constant 0 : index
    %0 = vector.load %arg1[%c0, %c0_0, %c0_1] : memref<8x4x256xf32, #tpu.memory_space<vmem>>, vector<8x4x256xf32>
    %cst = arith.constant dense<0.000000e+00> : vector<8x4xf32>
    %1 = vector.multi_reduction <add>, %0, %cst [2] : vector<8x4x256xf32> to vector<8x4xf32>
    %c0_2 = arith.constant 0 : index
    %c0_3 = arith.constant 0 : index
    %2 = vector.load %arg2[%c0_2, %c0_3] : memref<4x16xf32, #tpu.memory_space<vmem>>, vector<4x16xf32>
    %c0_4 = arith.constant 0 : index
    %c0_5 = arith.constant 0 : index
    %3 = vector.load %arg3[%c0_4, %c0_5] : memref<16x128xf32, #tpu.memory_space<vmem>>, vector<16x128xf32>
    %c0_6 = arith.constant 0 : index
    %c0_7 = arith.constant 0 : index
    %4 = vector.load %arg4[%c0_6, %c0_7] : memref<1x128xf32, #tpu.memory_space<vmem>>, vector<1x128xf32>
    %cst_8 = arith.constant dense<0.000000e+00> : vector<8x16xf32>
    %5 = tpu.matmul %1, %2, %cst_8 {dimension_numbers = #tpu.dot_dimension_numbers<[1], [0], [0], [1], [0, 0, 1, 1], [], []>} : vector<8x4xf32>, vector<4x16xf32>, vector<8x16xf32> -> vector<8x16xf32>
    %cst_9 = arith.constant 0.000000e+00 : f32
    %6 = vector.broadcast %cst_9 : f32 to vector<8x16xf32>
    %7 = arith.maximumf %5, %6 : vector<8x16xf32>
    %cst_10 = arith.constant dense<0.000000e+00> : vector<8x128xf32>
    %8 = tpu.matmul %7, %3, %cst_10 {dimension_numbers = #tpu.dot_dimension_numbers<[1], [0], [0], [1], [0, 0, 1, 1], [], []>} : vector<8x16xf32>, vector<16x128xf32>, vector<8x128xf32> -> vector<8x128xf32>
    %9 = vector.broadcast %4 : vector<1x128xf32> to vector<8x128xf32>
    %10 = arith.addf %8, %9 : vector<8x128xf32>
    %11 = tpu.iota {dimensions = array<i32: 1>} : vector<8x128xi32>
    %cst_11 = arith.constant 0.000000e+00 : f32
    %12 = vector.broadcast %cst_11 : f32 to vector<8x128xf32>
    %13 = arith.subf %12, %10 : vector<8x128xf32>
    %14 = math.exp %13 : vector<8x128xf32>
    %cst_12 = arith.constant 1.000000e+00 : f32
    %15 = vector.broadcast %cst_12 : f32 to vector<8x128xf32>
    %16 = arith.addf %15, %14 : vector<8x128xf32>
    %cst_13 = arith.constant 1.000000e+00 : f32
    %17 = vector.broadcast %cst_13 : f32 to vector<8x128xf32>
    %18 = arith.divf %17, %16 : vector<8x128xf32>
    %c21_i32 = arith.constant 21 : i32
    %19 = vector.broadcast %c21_i32 : i32 to vector<8x128xi32>
    %20 = arith.cmpi sge, %11, %19 : vector<8x128xi32>
    %c25_i32 = arith.constant 25 : i32
    %21 = vector.broadcast %c25_i32 : i32 to vector<8x128xi32>
    %22 = arith.cmpi slt, %11, %21 : vector<8x128xi32>
    %23 = arith.andi %20, %22 : vector<8x128xi1>
    %cst_14 = arith.constant 0xFF800000 : f32
    %24 = vector.broadcast %cst_14 : f32 to vector<8x128xf32>
    %25 = arith.select %23, %10, %24 : vector<8x128xi1>, vector<8x128xf32>
    %cst_15 = arith.constant dense<0xFF800000> : vector<8xf32>
    %26 = vector.multi_reduction <maximumf>, %25, %cst_15 [1] : vector<8x128xf32> to vector<8xf32>
    %27 = vector.shape_cast %26 : vector<8xf32> to vector<8x1xf32>
    %28 = vector.broadcast %27 : vector<8x1xf32> to vector<8x128xf32>
    %29 = arith.subf %25, %28 : vector<8x128xf32>
    %30 = math.exp %29 : vector<8x128xf32>
    %cst_16 = arith.constant 0.000000e+00 : f32
    %31 = vector.broadcast %cst_16 : f32 to vector<8x128xf32>
    %32 = arith.select %23, %30, %31 : vector<8x128xi1>, vector<8x128xf32>
    %cst_17 = arith.constant dense<0.000000e+00> : vector<8xf32>
    %33 = vector.multi_reduction <add>, %32, %cst_17 [1] : vector<8x128xf32> to vector<8xf32>
    %34 = vector.shape_cast %33 : vector<8xf32> to vector<8x1xf32>
    %35 = vector.broadcast %34 : vector<8x1xf32> to vector<8x128xf32>
    %36 = arith.divf %32, %35 : vector<8x128xf32>
    %c21_i32_18 = arith.constant 21 : i32
    %37 = vector.broadcast %c21_i32_18 : i32 to vector<8x128xi32>
    %38 = arith.cmpi slt, %11, %37 : vector<8x128xi32>
    %39 = arith.select %38, %18, %36 : vector<8x128xi1>, vector<8x128xf32>
    %c0_19 = arith.constant 0 : index
    %c0_20 = arith.constant 0 : index
    %40 = vector.load %arg5[%c0_19, %c0_20] : memref<8x128xf32, #tpu.memory_space<vmem>>, vector<8x128xf32>
    tpu.vector_store %arg5[%c0_19, %c0_20], %39 {strides = array<i32>} : memref<8x128xf32, #tpu.memory_space<vmem>>, vector<8x128xf32>,
    return
  }
  func.func @transform_0(%arg0: i32) -> (i32, i32, i32) {
    %c0_i32 = arith.constant 0 : i32
    %c0_i32_0 = arith.constant 0 : i32
    %c0_i32_1 = arith.constant 0 : i32
    %c0_i32_2 = arith.constant 0 : i32
    return %c0_i32, %c0_i32_0, %c0_i32_1 : i32, i32, i32
  }
  func.func @transform_1(%arg0: i32) -> (i32, i32) {
    %c0_i32 = arith.constant 0 : i32
    %c0_i32_0 = arith.constant 0 : i32
    %c0_i32_1 = arith.constant 0 : i32
    return %c0_i32, %c0_i32_0 : i32, i32
  }
  func.func @transform_2(%arg0: i32) -> (i32, i32) {
    %c0_i32 = arith.constant 0 : i32
    %c0_i32_0 = arith.constant 0 : i32
    %c0_i32_1 = arith.constant 0 : i32
    return %c0_i32, %c0_i32_0 : i32, i32
  }
  func.func @transform_3(%arg0: i32) -> (i32, i32) {
    %c0_i32 = arith.constant 0 : i32
    %c0_i32_0 = arith.constant 0 : i32
    %c0_i32_1 = arith.constant 0 : i32
    return %c0_i32, %c0_i32_0 : i32, i32
  }
  func.func @transform_4(%arg0: i32) -> (i32, i32) {
    %c0_i32 = arith.constant 0 : i32
    %c0_i32_0 = arith.constant 0 : i32
    %c0_i32_1 = arith.constant 0 : i32
    return %c0_i32, %c0_i32_0 : i32, i32
  }
}

</mosaic_0001>

<llo_original>
// kernel: attention_forward.1
$region0: #{attention_forward.1}
  #allocation0 [shape = 'u32[]', space=smem, size = 0x4, offset = 0x4, fixed_abs, tag = 'smem constant byte address 0x4 - core index']
  #allocation1 [shape = 'u32[144,128]{1,0:T(1,128)}', space=vmem, size = 0x12000, scoped, tag = 'internal scratch']
  %s0 = inlined_call_operand.vmem [shape: f32[8,4,256], index: 0, kind: input, shape index: {}]
  %s1 = inlined_call_operand.vmem [shape: f32[4,16], index: 1, kind: input, shape index: {}]
  %s2 = inlined_call_operand.vmem [shape: f32[16,128], index: 2, kind: input, shape index: {}]
  %s3 = inlined_call_operand.vmem [shape: f32[1,128], index: 3, kind: input, shape index: {}]
  %s4 = inlined_call_operand.vmem [shape: f32[8,128], index: 4, kind: output, shape index: {}]
  %s5 = sld [smem:[#allocation0]]
  $region26: #{attention_forward.1} parent=0
    _
  %s7 = ssub.s32 1, %s5
  %s8 = scalar_select 0, %s7, %s5
  // Predicated region
  $region2: #{attention_forward.1} parent=0 // pred_check
    _
  $region3: #{attention_forward.1} parent=0 // pred_check_branch
    %10 = sbr.rel (0) target = $region5
  $region4: #{attention_forward.1} parent=0 // pred_region
    _
  $region5: #{attention_forward.1} parent=0 // pred_fallthru
    _
  // Predicated region
  $region6: #{attention_forward.1} parent=0 // pred_check
    _
  $region7: #{attention_forward.1} parent=0 // pred_check_branch
    %12 = sbr.rel (0) target = $region9
  $region8: #{attention_forward.1} parent=0 // pred_region
    _
  $region9: #{attention_forward.1} parent=0 // pred_fallthru
    _
  // Predicated region
  $region10: #{attention_forward.1} parent=0 // pred_check
    _
  $region11: #{attention_forward.1} parent=0 // pred_check_branch
    %14 = sbr.rel (0) target = $region13
  $region12: #{attention_forward.1} parent=0 // pred_region
    _
  $region13: #{attention_forward.1} parent=0 // pred_fallthru
    _
  // Predicated region
  $region14: #{attention_forward.1} parent=0 // pred_check
    _
  $region15: #{attention_forward.1} parent=0 // pred_check_branch
    %16 = sbr.rel (0) target = $region17
  $region16: #{attention_forward.1} parent=0 // pred_region
    _
  $region17: #{attention_forward.1} parent=0 // pred_fallthru
    _
  %v17 = vld [vmem:[%s0] sm:$0xff]
  %v18 = vld [vmem:[%s0 + $0x8] sm:$0xff]
  %v19 = vld [vmem:[%s0 + $0x10] sm:$0xff]
  %v20 = vld [vmem:[%s0 + $0x18] sm:$0xff]
  %v21 = vld [vmem:[%s0 + $0x20] sm:$0xff]
  %v22 = vld [vmem:[%s0 + $0x28] sm:$0xff]
  %v23 = vld [vmem:[%s0 + $0x30] sm:$0xff]
  %v24 = vld [vmem:[%s0 + $0x38] sm:$0xff]
  %v33 = vcombine.high %v17, %v17
  %v34 = vcombine.high %v18, %v18
  %v35 = vcombine.high %v19, %v19
  %v36 = vcombine.high %v20, %v20
  %v37 = vcombine.high %v21, %v21
  %v38 = vcombine.high %v22, %v22
  %v39 = vcombine.high %v23, %v23
  %v40 = vcombine.high %v24, %v24
  %vm49 = vcmask 1043456
  %v50 = vsel %vm49, %v17, 0.0
  %v51 = vsel %vm49, %v33, 0.0
  %v52 = vadd.f32 %v50, %v51
  %53 = vadd.xlane.f32.xlu0 %v52
  %v54 = vpop.xlane.xlu0 %53
  %v55 = vsel %vm49, %v18, 0.0
  %v56 = vsel %vm49, %v34, 0.0
  %v57 = vadd.f32 %v55, %v56
  %58 = vadd.xlane.f32.xlu0 %v57
  %v59 = vpop.xlane.xlu0 %58
  %v60 = vsel %vm49, %v19, 0.0
  %v61 = vsel %vm49, %v35, 0.0
  %v62 = vadd.f32 %v60, %v61
  %63 = vadd.xlane.f32.xlu0 %v62
  %v64 = vpop.xlane.xlu0 %63
  %v65 = vsel %vm49, %v20, 0.0
  %v66 = vsel %vm49, %v36, 0.0
  %v67 = vadd.f32 %v65, %v66
  %68 = vadd.xlane.f32.xlu0 %v67
  %v69 = vpop.xlane.xlu0 %68
  %v70 = vsel %vm49, %v21, 0.0
  %v71 = vsel %vm49, %v37, 0.0
  %v72 = vadd.f32 %v70, %v71
  %73 = vadd.xlane.f32.xlu0 %v72
  %v74 = vpop.xlane.xlu0 %73
  %v75 = vsel %vm49, %v22, 0.0
  %v76 = vsel %vm49, %v38, 0.0
  %v77 = vadd.f32 %v75, %v76
  %78 = vadd.xlane.f32.xlu0 %v77
  %v79 = vpop.xlane.xlu0 %78
  %v80 = vsel %vm49, %v23, 0.0
  %v81 = vsel %vm49, %v39, 0.0
  %v82 = vadd.f32 %v80, %v81
  %83 = vadd.xlane.f32.xlu0 %v82
  %v84 = vpop.xlane.xlu0 %83
  %v85 = vsel %vm49, %v24, 0.0
  %v86 = vsel %vm49, %v40, 0.0
  %v87 = vadd.f32 %v85, %v86
  %88 = vadd.xlane.f32.xlu0 %v87
  %v89 = vpop.xlane.xlu0 %88
  %v90 = vld [vmem:[%s1] sm:$0xf]
  %v91 = vld [vmem:[%s2] sm:$0xff]
  %v92 = vld [vmem:[%s2 + $0x8] sm:$0xff]
  %v93 = vld [vmem:[%s3] sm:$0x1]
  %v102 = vlaneseq
  %v103 = vand.u32 %v102, 127
  %v104 = vlaneseq
  %v105 = vshrl.u32 %v104, 7
  %v106 = vsub.s32 %v103, %v105
  %v107 = vrot.slane %v54, %v106
  %v108 = vlaneseq
  %v109 = vshrl.u32 %v108, 7
  %v110 = vsub.s32 %v103, %v109
  %v111 = vrot.slane %v59, %v110
  %v112 = vlaneseq
  %v113 = vshrl.u32 %v112, 7
  %v114 = vsub.s32 %v103, %v113
  %v115 = vrot.slane %v64, %v114
  %v116 = vlaneseq
  %v117 = vshrl.u32 %v116, 7
  %v118 = vsub.s32 %v103, %v117
  %v119 = vrot.slane %v69, %v118
  %v120 = vlaneseq
  %v121 = vshrl.u32 %v120, 7
  %v122 = vsub.s32 %v103, %v121
  %v123 = vrot.slane %v74, %v122
  %v124 = vlaneseq
  %v125 = vshrl.u32 %v124, 7
  %v126 = vsub.s32 %v103, %v125
  %v127 = vrot.slane %v79, %v126
  %v128 = vlaneseq
  %v129 = vshrl.u32 %v128, 7
  %v130 = vsub.s32 %v103, %v129
  %v131 = vrot.slane %v84, %v130
  %v132 = vlaneseq
  %v133 = vshrl.u32 %v132, 7
  %v134 = vsub.s32 %v103, %v133
  %v135 = vrot.slane %v89, %v134
  %vm136 = vcmask 1041409
  %v137 = vsel %vm136, %v111, %v107
  %vm138 = vcmask 1042434
  %v139 = vsel %vm138, %v115, %v137
  %vm140 = vcmask 1043459
  %v141 = vsel %vm140, %v119, %v139
  %vm142 = vcmask 1044484
  %v143 = vsel %vm142, %v123, %v141
  %vm144 = vcmask 1045509
  %v145 = vsel %vm144, %v127, %v143
  %vm146 = vcmask 1046534
  %v147 = vsel %vm146, %v131, %v145
  %vm148 = vcmask 1047559
  %v149 = vsel %vm148, %v135, %v147
  %vm150 = vcmask 31744
  %v151 = vsel %vm150, %v149, 0
  %v154 = vsel %vm49, %v90, 0
  %156 = vmatprep.subr.mxu0 0.0
  %157 = vmatpush1.msra.mxu0 0.0
  %158 = vmatprep.subr.mxu0 0.0
  %159 = vmatpush1.msra.mxu0 0.0
  %160 = vmatprep.subr.mxu0 0.0
  %161 = vmatpush1.msra.mxu0 0.0
  %162 = vmatprep.subr.mxu0 0.0
  %163 = vmatpush1.msra.mxu0 0.0
  %164 = vmatprep.subr.mxu0 0.0
  %165 = vmatpush1.msra.mxu0 0.0
  %166 = vmatprep.subr.mxu0 0.0
  %167 = vmatpush1.msra.mxu0 0.0
  %168 = vmatprep.subr.mxu0 0.0
  %169 = vmatpush1.msra.mxu0 0.0
  %170 = vmatprep.subr.mxu0 0.0
  %171 = vmatpush1.msra.mxu0 0.0
  %172 = vmatprep.subr.mxu0 0.0
  %173 = vmatpush1.msra.mxu0 0.0
  %174 = vmatprep.subr.mxu0 0.0
  %175 = vmatpush1.msra.mxu0 0.0
  %176 = vmatprep.subr.mxu0 0.0
  %177 = vmatpush1.msra.mxu0 0.0
  %178 = vmatprep.subr.mxu0 0.0
  %179 = vmatpush1.msra.mxu0 0.0
  %180 = vmatprep.subr.mxu0 0.0
  %181 = vmatpush1.msra.mxu0 0.0
  %182 = vmatprep.subr.mxu0 0.0
  %183 = vmatpush1.msra.mxu0 0.0
  %184 = vmatprep.subr.mxu0 0.0
  %185 = vmatpush1.msra.mxu0 0.0
  %186 = vmatprep.subr.mxu0 0.0
  %187 = vmatpush1.msra.mxu0 %v154
  %188 = vmatprep.subr.mxu0 0.0
  %189 = vmatpush2.msra.mxu0 0.0
  %190 = vmatprep.subr.mxu0 0.0
  %191 = vmatpush2.msra.mxu0 0.0
  %192 = vmatprep.subr.mxu0 0.0
  %193 = vmatpush2.msra.mxu0 0.0
  %194 = vmatprep.subr.mxu0 0.0
  %195 = vmatpush2.msra.mxu0 0.0
  %196 = vmatprep.subr.mxu0 0.0
  %197 = vmatpush2.msra.mxu0 0.0
  %198 = vmatprep.subr.mxu0 0.0
  %199 = vmatpush2.msra.mxu0 0.0
  %200 = vmatprep.subr.mxu0 0.0
  %201 = vmatpush2.msra.mxu0 0.0
  %202 = vmatprep.subr.mxu0 0.0
  %203 = vmatpush2.msra.mxu0 0.0
  %204 = vmatprep.subr.mxu0 0.0
  %205 = vmatpush2.msra.mxu0 0.0
  %206 = vmatprep.subr.mxu0 0.0
  %207 = vmatpush2.msra.mxu0 0.0
  %208 = vmatprep.subr.mxu0 0.0
  %209 = vmatpush2.msra.mxu0 0.0
  %210 = vmatprep.subr.mxu0 0.0
  %211 = vmatpush2.msra.mxu0 0.0
  %212 = vmatprep.subr.mxu0 0.0
  %213 = vmatpush2.msra.mxu0 0.0
  %214 = vmatprep.subr.mxu0 0.0
  %215 = vmatpush2.msra.mxu0 0.0
  %216 = vmatprep.subr.mxu0 0.0
  %217 = vmatpush2.msra.mxu0 0.0
  %218 = vmatprep.subr.mxu0 0.0
  %219 = vmatpush2.msra.mxu0 0.0
  %220 = vmatprep.mubr.f32.mxu0 0.0
  %221 = vmatmul.mubr.f32.gmra.mxu0 %v151
  %v222 = vpop.f32.mrf.mxu0
  %v223 = vadd.f32 0.0, %v222
  %v224 = vpop.f32.mrf.mxu0
  %225 = vdwg.mxu0
  %v226 = vmax.f32 %v223, 0.0
  %v228 = vlaneseq
  %v229 = vshrl.u32 %v228, 7
  %v230 = vsub.s32 0, %v229
  %v231 = vrot.slane %v93, %v230
  %vm233 = vcmask 130048
  %v235 = vsel %vm233, %v226, 0
  %237 = vmatprep.subr.mxu0 0.0
  %238 = vmatpush1.msra.mxu0 0.0
  %239 = vmatprep.subr.mxu0 0.0
  %240 = vmatpush1.msra.mxu0 0.0
  %241 = vmatprep.subr.mxu0 0.0
  %242 = vmatpush1.msra.mxu0 0.0
  %243 = vmatprep.subr.mxu0 0.0
  %244 = vmatpush1.msra.mxu0 0.0
  %245 = vmatprep.subr.mxu0 0.0
  %246 = vmatpush1.msra.mxu0 0.0
  %247 = vmatprep.subr.mxu0 0.0
  %248 = vmatpush1.msra.mxu0 0.0
  %249 = vmatprep.subr.mxu0 0.0
  %250 = vmatpush1.msra.mxu0 0.0
  %251 = vmatprep.subr.mxu0 0.0
  %252 = vmatpush1.msra.mxu0 0.0
  %253 = vmatprep.subr.mxu0 0.0
  %254 = vmatpush1.msra.mxu0 0.0
  %255 = vmatprep.subr.mxu0 0.0
  %256 = vmatpush1.msra.mxu0 0.0
  %257 = vmatprep.subr.mxu0 0.0
  %258 = vmatpush1.msra.mxu0 0.0
  %259 = vmatprep.subr.mxu0 0.0
  %260 = vmatpush1.msra.mxu0 0.0
  %261 = vmatprep.subr.mxu0 0.0
  %262 = vmatpush1.msra.mxu0 0.0
  %263 = vmatprep.subr.mxu0 0.0
  %264 = vmatpush1.msra.mxu0 0.0
  %265 = vmatprep.subr.mxu0 0.0
  %266 = vmatpush1.msra.mxu0 %v92
  %267 = vmatprep.subr.mxu0 0.0
  %268 = vmatpush1.msra.mxu0 %v91
  %269 = vmatprep.subr.mxu0 0.0
  %270 = vmatpush2.msra.mxu0 0.0
  %271 = vmatprep.subr.mxu0 0.0
  %272 = vmatpush2.msra.mxu0 0.0
  %273 = vmatprep.subr.mxu0 0.0
  %274 = vmatpush2.msra.mxu0 0.0
  %275 = vmatprep.subr.mxu0 0.0
  %276 = vmatpush2.msra.mxu0 0.0
  %277 = vmatprep.subr.mxu0 0.0
  %278 = vmatpush2.msra.mxu0 0.0
  %279 = vmatprep.subr.mxu0 0.0
  %280 = vmatpush2.msra.mxu0 0.0
  %281 = vmatprep.subr.mxu0 0.0
  %282 = vmatpush2.msra.mxu0 0.0
  %283 = vmatprep.subr.mxu0 0.0
  %284 = vmatpush2.msra.mxu0 0.0
  %285 = vmatprep.subr.mxu0 0.0
  %286 = vmatpush2.msra.mxu0 0.0
  %287 = vmatprep.subr.mxu0 0.0
  %288 = vmatpush2.msra.mxu0 0.0
  %289 = vmatprep.subr.mxu0 0.0
  %290 = vmatpush2.msra.mxu0 0.0
  %291 = vmatprep.subr.mxu0 0.0
  %292 = vmatpush2.msra.mxu0 0.0
  %293 = vmatprep.subr.mxu0 0.0
  %294 = vmatpush2.msra.mxu0 0.0
  %295 = vmatprep.subr.mxu0 0.0
  %296 = vmatpush2.msra.mxu0 0.0
  %297 = vmatprep.subr.mxu0 0.0
  %298 = vmatpush2.msra.mxu0 0.0
  %299 = vmatprep.subr.mxu0 0.0
  %300 = vmatpush2.msra.mxu0 0.0
  %301 = vmatprep.mubr.f32.mxu0 0.0
  %302 = vmatmul.mubr.f32.gmra.mxu0 %v235
  %v303 = vpop.f32.mrf.mxu0
  %v304 = vadd.f32 %v231, %v303
  %v305 = vpop.f32.mrf.mxu0
  %306 = vdwg.mxu0
  %v307 = vsub.f32 0.0, %v304
  %v308 = vmul.f32 %v307, 1.442695
  %v309 = vpow.pop %v308
  %v310 = vadd.f32 %v309, 1.0
  %v311 = vrcp.pop %v310
  %v312 = vmul.f32 1.0, %v311
  %vm313 = vcmp.ge.s32.totalorder %v103, 21
  %vm314 = vcmp.lt.s32.totalorder %v103, 25
  %vm315 = vmand %vm313, %vm314
  %v316 = vsel %vm315, %v304, -inf
  %317 = vmax.xlane.f32.xlu0 %v316
  %v318 = vpop.xlane.xlu0 %317
  %v319 = vsub.f32 %v316, %v318
  %v320 = vmul.f32 %v319, 1.442695
  %v321 = vpow.pop %v320
  %v322 = vsel %vm315, %v321, 0.0
  %323 = vadd.xlane.f32.xlu0 %v322
  %v324 = vpop.xlane.xlu0 %323
  %v325 = vrcp.pop %v324
  %v326 = vmul.f32 %v322, %v325
  %vm327 = vcmp.lt.s32.totalorder %v103, 21
  %v328 = vsel %vm327, %v312, %v326
  %329 = vst [vmem:[%s4] sm:$0xff] %v328
  // Predicated region
  $region18: #{attention_forward.1} parent=0 // pred_check
    _
  $region19: #{attention_forward.1} parent=0 // pred_check_branch
    %331 = sbr.rel (0) target = $region21
  $region20: #{attention_forward.1} parent=0 // pred_region
    _
  $region21: #{attention_forward.1} parent=0 // pred_fallthru
    _
  // Predicated region
  $region22: #{attention_forward.1} parent=0 // pred_check
    _
  $region23: #{attention_forward.1} parent=0 // pred_check_branch
    %333 = sbr.rel (0) target = $region25
  $region24: #{attention_forward.1} parent=0 // pred_region
    _
  $region25: #{attention_forward.1} parent=0 // pred_fallthru
    _

</llo_original>
